<compile_context>
chip_gen: v7x
topology: tpu7x:2x2x1
jax: 0.10.0
libtpu: 0.0.40
codegen_flags: <defaults>
</compile_context>

<pallas_src>
import jax
import jax.numpy as jnp
from jax.experimental import pallas as pl
from jax.experimental.pallas import tpu as pltpu


def _pick_row_tile(n_rows):
    # Largest row tile that evenly divides n_rows; a full-array block is always
    # legal even when n_rows is not a multiple of 8.
    for t in (256, 128):
        if n_rows % t == 0:
            return t
    return n_rows


# ----------------------------------------------------------------------------
# Kernel 1: fused two-head forward (predictor + generator share one feats load)
# ----------------------------------------------------------------------------
def _fused_heads_kernel(v_ref, wp_ref, wg_ref, pred_ref, cap_ref):
    x = v_ref[...]                                            # bf16 (TB, D)
    pred_ref[...] = jnp.dot(x, wp_ref[...],
                            preferred_element_type=jnp.float32)
    cap_ref[...] = jnp.dot(x, wg_ref[...],
                           preferred_element_type=jnp.float32)


def fused_heads(feats_bf16, w_pred_bf16, w_gen_bf16):
    B, D = feats_bf16.shape
    A = w_pred_bf16.shape[1]
    V = w_gen_bf16.shape[1]
    tb = _pick_row_tile(B)
    return pl.pallas_call(
        _fused_heads_kernel,
        out_shape=(jax.ShapeDtypeStruct((B, A), jnp.float32),
                   jax.ShapeDtypeStruct((B, V), jnp.float32)),
        grid_spec=pltpu.PrefetchScalarGridSpec(
            num_scalar_prefetch=0,
            grid=(B // tb,),
            in_specs=[pl.BlockSpec((tb, D), lambda i: (i, 0)),
                      pl.BlockSpec((D, A), lambda i: (0, 0)),
                      pl.BlockSpec((D, V), lambda i: (0, 0))],
            out_specs=(pl.BlockSpec((tb, A), lambda i: (i, 0)),
                       pl.BlockSpec((tb, V), lambda i: (i, 0)))),
        compiler_params=pltpu.CompilerParams(
            dimension_semantics=("parallel",),
            vmem_limit_bytes=32 * 1024 * 1024),
    )(feats_bf16, w_pred_bf16, w_gen_bf16)


# ----------------------------------------------------------------------------
# Kernel 2: fully fused get_loss compute:
#   matmuls (both heads) + BCE-with-logits sum + VQA score sum + caption
#   softmax-CE sum, accumulated across row tiles in SMEM scratch.
# ----------------------------------------------------------------------------
def _fused_loss_kernel(cap_tgt_ref,                       # (B,) int32 in SMEM
                       v_ref, wp_ref, wg_ref, a_ref,      # VMEM tiles
                       vqa_sum_ref, score_sum_ref, cap_sum_ref,  # (1,1) SMEM
                       acc_ref):                          # (4,) f32 SMEM
    i = pl.program_id(0)

    @pl.when(i == 0)
    def _init():
        acc_ref[0] = jnp.float32(0.0)
        acc_ref[1] = jnp.float32(0.0)
        acc_ref[2] = jnp.float32(0.0)

    x = v_ref[...]                                         # bf16 (TB, D)
    pred = jnp.dot(x, wp_ref[...], preferred_element_type=jnp.float32)
    cap_logits = jnp.dot(x, wg_ref[...], preferred_element_type=jnp.float32)
    t = a_ref[...]                                         # f32 (TB, A)
    tb, A = pred.shape
    V = cap_logits.shape[1]

    # --- VQA BCE-with-logits, summed over the tile (per-row lane reduce,
    #     then sublane sum; one exp + one log1p per element). ---
    bce = jnp.maximum(pred, 0.0) - pred * t + jnp.log1p(jnp.exp(-jnp.abs(pred)))
    bce_part = jnp.sum(jnp.sum(bce, axis=1))

    # --- VQA score: one-hot at the first argmax of each row, dotted with t ---
    mx = jnp.max(pred, axis=1, keepdims=True)
    a_iota = jax.lax.broadcasted_iota(jnp.int32, (tb, A), 1)
    first_max = jnp.min(jnp.where(pred == mx, a_iota, A), axis=1, keepdims=True)
    score_part = jnp.sum(jnp.where(a_iota == first_max, t, 0.0))

    # --- Caption softmax cross-entropy, summed over tile rows. ---
    m = jnp.max(cap_logits, axis=1, keepdims=True)
    lse = m + jnp.log(jnp.sum(jnp.exp(cap_logits - m), axis=1, keepdims=True))
    lane_iota = jax.lax.broadcasted_iota(jnp.int32, (1, V), 1)
    picked = jnp.float32(0.0)
    # Targets live in SMEM (scalar prefetch); gather the picked logit per row
    # via a masked lane reduce.
    # TODO(synk): vectorize this target gather for large row tiles; also
    # ce_for_language_model here has no ignore_index / padding mask.
    for r in range(tb):
        tgt = cap_tgt_ref[i * tb + r]
        picked += jnp.sum(
            jnp.where(lane_iota == tgt, cap_logits[r:r + 1, :], 0.0))
    ce_part = jnp.sum(lse) - picked

    acc_ref[0] += bce_part
    acc_ref[1] += score_part
    acc_ref[2] += ce_part

    @pl.when(i == pl.num_programs(0) - 1)
    def _finalize():
        vqa_sum_ref[0, 0] = acc_ref[0]
        score_sum_ref[0, 0] = acc_ref[1]
        cap_sum_ref[0, 0] = acc_ref[2]


def fused_losses(cap_target, feats_bf16, w_pred_bf16, w_gen_bf16, a_target):
    B, D = feats_bf16.shape
    A = w_pred_bf16.shape[1]
    V = w_gen_bf16.shape[1]
    tb = _pick_row_tile(B)
    scalar_out = jax.ShapeDtypeStruct((1, 1), jnp.float32)
    smem_scalar_spec = pl.BlockSpec((1, 1), lambda i, cap: (0, 0),
                                    memory_space=pltpu.MemorySpace.SMEM)
    vqa_sum, score_sum, ce_sum = pl.pallas_call(
        _fused_loss_kernel,
        out_shape=(scalar_out, scalar_out, scalar_out),
        grid_spec=pltpu.PrefetchScalarGridSpec(
            num_scalar_prefetch=1,
            grid=(B // tb,),
            in_specs=[pl.BlockSpec((tb, D), lambda i, cap: (i, 0)),
                      pl.BlockSpec((D, A), lambda i, cap: (0, 0)),
                      pl.BlockSpec((D, V), lambda i, cap: (0, 0)),
                      pl.BlockSpec((tb, A), lambda i, cap: (i, 0))],
            out_specs=(smem_scalar_spec, smem_scalar_spec, smem_scalar_spec),
            scratch_shapes=[pltpu.SMEM((4,), jnp.float32)]),
        compiler_params=pltpu.CompilerParams(
            dimension_semantics=("arbitrary",),   # scalar accumulator axis
            vmem_limit_bytes=32 * 1024 * 1024),
    )(cap_target.astype(jnp.int32), feats_bf16, w_pred_bf16, w_gen_bf16,
      a_target.astype(jnp.float32))
    return vqa_sum[0, 0], score_sum[0, 0], ce_sum[0, 0]


# ----------------------------------------------------------------------------
# Wrapper (JAX version).  encoder is None -> identity; predictor / generator
# are deterministic linear heads.  log_vars = zeros(2) (nn.Parameter init).
# ----------------------------------------------------------------------------
class Wrapper:
    def __init__(self, w_pred, w_gen, use_mtl=True):
        # bf16 weights: native MXU dtype on v5e/v6e/v7x, halves weight DMA.
        self.w_pred = w_pred.astype(jnp.bfloat16)     # (D, A)
        self.w_gen = w_gen.astype(jnp.bfloat16)       # (D, V)
        self.use_mtl = use_mtl
        if use_mtl:
            self.log_vars = jnp.zeros((2,), jnp.float32)

    def forward(self, batch):
        feats = batch['v'].astype(jnp.bfloat16)        # encoder=None -> identity
        predict, cap_logits = fused_heads(feats, self.w_pred, self.w_gen)
        caption = {'predict': cap_logits, 'target': batch['cap_target']}
        return predict, caption

    def get_loss(self, batch):
        feats = batch['v'].astype(jnp.bfloat16)
        a_target = batch['a'].astype(jnp.float32)
        B = a_target.shape[0]
        n_cap = batch['cap_target'].shape[0]

        # Single fused kernel: matmuls + losses + score (no logits in HBM).
        bce_sum, score_sum, ce_sum = fused_losses(
            batch['cap_target'], feats, self.w_pred, self.w_gen, a_target)

        # mean(BCE)*num_answers == sum/(B*A)*A == sum/B ; CE mean over rows.
        loss_vqa = bce_sum / B
        loss_cap = ce_sum / n_cap
        score = score_sum / B

        writes = {'train/vqa/loss': loss_vqa,
                  'train/score': score,
                  'train/cap/loss': loss_cap}

        loss = jnp.float32(0.0)
        if self.use_mtl:
            loss = loss + jnp.exp(-self.log_vars[0]) * loss_vqa + self.log_vars[0]
            loss = loss + jnp.exp(-self.log_vars[1]) * loss_cap + self.log_vars[1]
        else:
            loss = loss + loss_vqa + loss_cap
        return loss, writes


# ----------------------------------------------------------------------------
# Pure-JAX reference (mirrors the kernel's bf16-operand / f32-accum matmuls).
# ----------------------------------------------------------------------------
def _reference_get_loss(batch, w_pred, w_gen, log_vars):
    x = batch['v'].astype(jnp.bfloat16)
    predict = jnp.dot(x, w_pred.astype(jnp.bfloat16),
                      preferred_element_type=jnp.float32)
    cap_logits = jnp.dot(x, w_gen.astype(jnp.bfloat16),
                         preferred_element_type=jnp.float32)
    t = batch['a'].astype(jnp.float32)
    B, C = t.shape

    bce = (jnp.maximum(predict, 0.0) - predict * t
           + jnp.log1p(jnp.exp(-jnp.abs(predict))))
    loss_vqa = jnp.mean(bce) * C

    idx = jnp.argmax(predict, axis=1)
    score = jnp.sum(t[jnp.arange(B), idx]) / B

    lse = jax.nn.logsumexp(cap_logits, axis=1)
    picked = cap_logits[jnp.arange(cap_logits.shape[0]), batch['cap_target']]
    loss_cap = jnp.mean(lse - picked)

    loss = (jnp.exp(-log_vars[0]) * loss_vqa + log_vars[0]
            + jnp.exp(-log_vars[1]) * loss_cap + log_vars[1])
    return loss, loss_vqa, loss_cap, score, predict, cap_logits


if __name__ == "__main__":
    B, D, A, V = 8, 128, 128, 256   # batch, feature dim, num answers, vocab

    key = jax.random.PRNGKey(0)
    k1, k2, k3, k4, k5 = jax.random.split(key, 5)

    w_pred = jax.random.normal(k1, (D, A), jnp.float32) * 0.05
    w_gen = jax.random.normal(k2, (D, V), jnp.float32) * 0.05

    batch = {
        'v': jax.random.normal(k3, (B, D), jnp.float32),
        'a': jax.random.uniform(k4, (B, A), jnp.float32),          # soft targets
        'cap_target': jax.random.randint(k5, (B,), 0, V, jnp.int32),
    }

    model = Wrapper(w_pred, w_gen, use_mtl=True)

    # forward: fused two-head matmul kernel.
    predict, caption = model.forward(batch)
    predict = jax.block_until_ready(predict)

    # get_loss: single fused matmul + loss kernel.
    loss, writes = model.get_loss(batch)
    loss = jax.block_until_ready(loss)

    (ref_loss, ref_vqa, ref_cap, ref_score,
     ref_pred, ref_caplog) = _reference_get_loss(batch, w_pred, w_gen,
                                                 model.log_vars)

    assert jnp.allclose(predict, ref_pred, rtol=5e-3, atol=5e-3)
    assert jnp.allclose(caption['predict'], ref_caplog, rtol=5e-3, atol=5e-3)
    assert jnp.allclose(loss, ref_loss, rtol=5e-3, atol=5e-3), (loss, ref_loss)
    assert jnp.allclose(writes['train/vqa/loss'], ref_vqa, rtol=5e-3, atol=5e-3)
    assert jnp.allclose(writes['train/cap/loss'], ref_cap, rtol=5e-3, atol=5e-3)
    assert jnp.allclose(writes['train/score'], ref_score, rtol=5e-3, atol=5e-3)

    print("KERNEL_OK")
</pallas_src>

<mosaic_0001>
module attributes {stable_mosaic.version = 11 : i64} {
  func.func @_fused_heads_kernel(%arg0: i32, %arg1: memref<8x128xbf16, #tpu.memory_space<vmem>>, %arg2: memref<128x128xbf16, #tpu.memory_space<vmem>>, %arg3: memref<128x256xbf16, #tpu.memory_space<vmem>>, %arg4: memref<8x128xf32, #tpu.memory_space<vmem>>, %arg5: memref<8x256xf32, #tpu.memory_space<vmem>>) attributes {dimension_semantics = [#tpu.dimension_semantics<parallel>], iteration_bounds = array<i64: 1>, scalar_prefetch = 0 : i64, scratch_operands = 0 : i64, tpu.core_type = #tpu.core_type<tc>, window_params = [{transform_indices = @transform_0, window_bounds = array<i64: 8, 128>}, {pipeline_mode = #tpu.pipeline_mode<synchronous>, transform_indices = @transform_1, window_bounds = array<i64: 128, 128>}, {pipeline_mode = #tpu.pipeline_mode<synchronous>, transform_indices = @transform_2, window_bounds = array<i64: 128, 256>}, {transform_indices = @transform_3, window_bounds = array<i64: 8, 128>}, {transform_indices = @transform_4, window_bounds = array<i64: 8, 256>}]} {
    %c0 = arith.constant 0 : index
    %c0_0 = arith.constant 0 : index
    %0 = vector.load %arg1[%c0, %c0_0] : memref<8x128xbf16, #tpu.memory_space<vmem>>, vector<8x128xbf16>
    %c0_1 = arith.constant 0 : index
    %c0_2 = arith.constant 0 : index
    %1 = vector.load %arg2[%c0_1, %c0_2] : memref<128x128xbf16, #tpu.memory_space<vmem>>, vector<128x128xbf16>
    %cst = arith.constant dense<0.000000e+00> : vector<8x128xf32>
    %2 = tpu.matmul %0, %1, %cst {dimension_numbers = #tpu.dot_dimension_numbers<[1], [0], [0], [1], [0, 0, 1, 1], [], []>} : vector<8x128xbf16>, vector<128x128xbf16>, vector<8x128xf32> -> vector<8x128xf32>
    %c0_3 = arith.constant 0 : index
    %c0_4 = arith.constant 0 : index
    %3 = vector.load %arg4[%c0_3, %c0_4] : memref<8x128xf32, #tpu.memory_space<vmem>>, vector<8x128xf32>
    tpu.vector_store %arg4[%c0_3, %c0_4], %2 {strides = array<i32>} : memref<8x128xf32, #tpu.memory_space<vmem>>, vector<8x128xf32>,
    %c0_5 = arith.constant 0 : index
    %c0_6 = arith.constant 0 : index
    %4 = vector.load %arg3[%c0_5, %c0_6] : memref<128x256xbf16, #tpu.memory_space<vmem>>, vector<128x256xbf16>
    %cst_7 = arith.constant dense<0.000000e+00> : vector<8x256xf32>
    %5 = tpu.matmul %0, %4, %cst_7 {dimension_numbers = #tpu.dot_dimension_numbers<[1], [0], [0], [1], [0, 0, 1, 1], [], []>} : vector<8x128xbf16>, vector<128x256xbf16>, vector<8x256xf32> -> vector<8x256xf32>
    %c0_8 = arith.constant 0 : index
    %c0_9 = arith.constant 0 : index
    %6 = vector.load %arg5[%c0_8, %c0_9] : memref<8x256xf32, #tpu.memory_space<vmem>>, vector<8x256xf32>
    tpu.vector_store %arg5[%c0_8, %c0_9], %5 {strides = array<i32>} : memref<8x256xf32, #tpu.memory_space<vmem>>, vector<8x256xf32>,
    return
  }
  func.func @transform_0(%arg0: i32) -> (i32, i32) {
    %c0_i32 = arith.constant 0 : i32
    %c0_i32_0 = arith.constant 0 : i32
    return %arg0, %c0_i32 : i32, i32
  }
  func.func @transform_1(%arg0: i32) -> (i32, i32) {
    %c0_i32 = arith.constant 0 : i32
    %c0_i32_0 = arith.constant 0 : i32
    %c0_i32_1 = arith.constant 0 : i32
    return %c0_i32, %c0_i32_0 : i32, i32
  }
  func.func @transform_2(%arg0: i32) -> (i32, i32) {
    %c0_i32 = arith.constant 0 : i32
    %c0_i32_0 = arith.constant 0 : i32
    %c0_i32_1 = arith.constant 0 : i32
    return %c0_i32, %c0_i32_0 : i32, i32
  }
  func.func @transform_3(%arg0: i32) -> (i32, i32) {
    %c0_i32 = arith.constant 0 : i32
    %c0_i32_0 = arith.constant 0 : i32
    return %arg0, %c0_i32 : i32, i32
  }
  func.func @transform_4(%arg0: i32) -> (i32, i32) {
    %c0_i32 = arith.constant 0 : i32
    %c0_i32_0 = arith.constant 0 : i32
    return %arg0, %c0_i32 : i32, i32
  }
}

</mosaic_0001>

<llo_original>
// kernel: tpu_custom_call.1
$region0: #{tpu_custom_call.1}
  #allocation0 [shape = 'u32[]', space=smem, size = 0x4, offset = 0x4, fixed_abs, tag = 'smem constant byte address 0x4 - core index']
  #allocation1 [shape = 'u32[144,128]{1,0:T(1,128)}', space=vmem, size = 0x12000, scoped, tag = 'internal scratch']
  %s0 = inlined_call_operand.hbm [shape: bf16[8,128], index: 0, kind: input, shape index: {}]
  %s1 = inlined_call_operand.hbm [shape: bf16[128,128], index: 1, kind: input, shape index: {}]
  %s2 = inlined_call_operand.hbm [shape: bf16[128,256], index: 2, kind: input, shape index: {}]
  %s3 = inlined_call_operand.hbm [shape: f32[8,128], index: 3, kind: output, shape index: {0}]
  %s4 = inlined_call_operand.hbm [shape: f32[8,256], index: 4, kind: output, shape index: {1}]
  %5 = xla_tuple %s3, %s4
  %s6 = sld [smem:[#allocation0]]
  $region42: #{tpu_custom_call.1} parent=0
    _
  %s8 = ssub.s32 1, %s6
  %s9 = scalar_select 0, %s8, %s6
  $region1: #{tpu_custom_call.1} parent=0
    #allocation2 [shape = 'u8[2048]{0}', space=vmem, size = 0x800, scoped, tag = 'input window, operand 0, single buffered']
    #allocation3 [shape = 's32[1]{0}', space=sflag, size = 0x4, scoped, tag = 'scoped memory for tpu_custom_call.1']
    #allocation4 [shape = 's32[1]{0}', space=sflag, size = 0x4, scoped, tag = 'scoped memory for tpu_custom_call.1']
    #allocation5 [shape = 'u8[32768]{0}', space=vmem, size = 0x8000, scoped, tag = 'input window, operand 1, single buffered']
    #allocation6 [shape = 's32[1]{0}', space=sflag, size = 0x4, scoped, tag = 'scoped memory for tpu_custom_call.1']
    #allocation7 [shape = 'u8[65536]{0}', space=vmem, size = 0x10000, scoped, tag = 'input window, operand 2, single buffered']
    #allocation8 [shape = 'u8[4096]{0}', space=vmem, size = 0x1000, scoped, tag = 'output window, operand 0, single buffered']
    #allocation9 [shape = 'u8[8192]{0}', space=vmem, size = 0x2000, scoped, tag = 'output window, operand 1, single buffered']
    #allocation10 [shape = 's32[1]{0}', space=sflag, size = 0x4, scoped, tag = 'scoped memory for tpu_custom_call.1']
    %10 = vsyncpa [#allocation3], 0
    %11 = vsyncpa [#allocation6], 0
    %12 = vsyncpa [#allocation4], 0
    %13 = vsyncpa [#allocation10], 0
    // Predicated region
    $region2: #{tpu_custom_call.1} parent=1 // pred_check
      _
    $region3: #{tpu_custom_call.1} parent=1 // pred_check_branch
      %15 = sbr.rel (0) target = $region5
    $region4: #{tpu_custom_call.1} parent=1 // pred_region
      %s17 = ssub.s32 64, 64
      %18 = vsyncadd [#allocation3], %s17
      %s20 = sshll.u32 [#allocation2], 4
      %s21 = int_to_ptr.vmem [resolvable:$true] %s20
      %23 = dma.hbm_to_vmem [thread:$0]  %s0, 64, %s21, [#allocation3]
    $region5: #{tpu_custom_call.1} parent=1 // pred_fallthru
      _
    // Predicated region
    $region6: #{tpu_custom_call.1} parent=1 // pred_check
      _
    $region7: #{tpu_custom_call.1} parent=1 // pred_check_branch
      %25 = sbr.rel (0) target = $region9
    $region8: #{tpu_custom_call.1} parent=1 // pred_region
      %s27 = ssub.s32 1024, 1024
      %28 = vsyncadd [#allocation6], %s27
      %s29 = sshll.u32 [#allocation5], 4
      %s30 = int_to_ptr.vmem [resolvable:$true] %s29
      %35 = dma.hbm_to_vmem [thread:$0]  %s1, 1024, %s30, [#allocation6], 64, 64, 4
    $region9: #{tpu_custom_call.1} parent=1 // pred_fallthru
      _
    // Predicated region
    $region10: #{tpu_custom_call.1} parent=1 // pred_check
      _
    $region11: #{tpu_custom_call.1} parent=1 // pred_check_branch
      %37 = sbr.rel (0) target = $region13
    $region12: #{tpu_custom_call.1} parent=1 // pred_region
      %s39 = ssub.s32 2048, 2048
      %40 = vsyncadd [#allocation6], %s39
      %s41 = sshll.u32 [#allocation7], 4
      %s42 = int_to_ptr.vmem [resolvable:$true] %s41
      %47 = dma.hbm_to_vmem [thread:$0]  %s2, 2048, %s42, [#allocation6], 128, 128, 8
    $region13: #{tpu_custom_call.1} parent=1 // pred_fallthru
      _
    // Predicated region
    $region14: #{tpu_custom_call.1} parent=1 // pred_check
      _
    $region15: #{tpu_custom_call.1} parent=1 // pred_check_branch
      %49 = sbr.rel (0) target = $region17
    $region16: #{tpu_custom_call.1} parent=1 // pred_region
      %50 = dma.done [#allocation3], 64
    $region17: #{tpu_custom_call.1} parent=1 // pred_fallthru
      _
    // Predicated region
    $region18: #{tpu_custom_call.1} parent=1 // pred_check
      _
    $region19: #{tpu_custom_call.1} parent=1 // pred_check_branch
      %52 = sbr.rel (0) target = $region21
    $region20: #{tpu_custom_call.1} parent=1 // pred_region
      %53 = dma.done [#allocation6], 1024
    $region21: #{tpu_custom_call.1} parent=1 // pred_fallthru
      _
    // Predicated region
    $region22: #{tpu_custom_call.1} parent=1 // pred_check
      _
    $region23: #{tpu_custom_call.1} parent=1 // pred_check_branch
      %55 = sbr.rel (0) target = $region25
    $region24: #{tpu_custom_call.1} parent=1 // pred_region
      %56 = dma.done [#allocation6], 2048
    $region25: #{tpu_custom_call.1} parent=1 // pred_fallthru
      _
    %v58 = vld [vmem:[#allocation2] sm:$0xf]
    %v59 = vld [vmem:[#allocation5] sm:$0xf]
    %v60 = vld [vmem:[#allocation5 + $0x4] sm:$0xf]
    %v61 = vld [vmem:[#allocation5 + $0x8] sm:$0xf]
    %v62 = vld [vmem:[#allocation5 + $0xc] sm:$0xf]
    %v63 = vld [vmem:[#allocation5 + $0x10] sm:$0xf]
    %v64 = vld [vmem:[#allocation5 + $0x14] sm:$0xf]
    %v65 = vld [vmem:[#allocation5 + $0x18] sm:$0xf]
    %v66 = vld [vmem:[#allocation5 + $0x1c] sm:$0xf]
    %v67 = vld [vmem:[#allocation5 + $0x20] sm:$0xf]
    %v68 = vld [vmem:[#allocation5 + $0x24] sm:$0xf]
    %v69 = vld [vmem:[#allocation5 + $0x28] sm:$0xf]
    %v70 = vld [vmem:[#allocation5 + $0x2c] sm:$0xf]
    %v71 = vld [vmem:[#allocation5 + $0x30] sm:$0xf]
    %v72 = vld [vmem:[#allocation5 + $0x34] sm:$0xf]
    %v73 = vld [vmem:[#allocation5 + $0x38] sm:$0xf]
    %v74 = vld [vmem:[#allocation5 + $0x3c] sm:$0xf]
    %v91 = vunpack.c.l.b16 %v59
    %v92 = vunpack.c.l.b16 %v60
    %v93 = vunpack.c.l.b16 %v61
    %v94 = vunpack.c.l.b16 %v62
    %v95 = vunpack.c.l.b16 %v63
    %v96 = vunpack.c.l.b16 %v64
    %v97 = vunpack.c.l.b16 %v65
    %v98 = vunpack.c.l.b16 %v66
    %v99 = vunpack.c.l.b16 %v67
    %v100 = vunpack.c.l.b16 %v68
    %v101 = vunpack.c.l.b16 %v69
    %v102 = vunpack.c.l.b16 %v70
    %v103 = vunpack.c.l.b16 %v71
    %v104 = vunpack.c.l.b16 %v72
    %v105 = vunpack.c.l.b16 %v73
    %v106 = vunpack.c.l.b16 %v74
    %v107 = vpack.c.b16 %v92, %v91
    %v108 = vpack.c.b16 %v94, %v93
    %v109 = vpack.c.b16 %v96, %v95
    %v110 = vpack.c.b16 %v98, %v97
    %v111 = vpack.c.b16 %v100, %v99
    %v112 = vpack.c.b16 %v102, %v101
    %v113 = vpack.c.b16 %v104, %v103
    %v114 = vpack.c.b16 %v106, %v105
    %123 = vmatprep.subr.bf16.mxu0 0
    %124 = vmatpush1.bf16.msra.mxu0 %v107
    %125 = vmatprep.subr.bf16.mxu0 0
    %126 = vmatpush1.bf16.msra.mxu0 %v108
    %127 = vmatprep.subr.bf16.mxu0 0
    %128 = vmatpush1.bf16.msra.mxu0 %v109
    %129 = vmatprep.subr.bf16.mxu0 0
    %130 = vmatpush1.bf16.msra.mxu0 %v110
    %131 = vmatprep.subr.bf16.mxu0 0
    %132 = vmatpush1.bf16.msra.mxu0 %v111
    %133 = vmatprep.subr.bf16.mxu0 0
    %134 = vmatpush1.bf16.msra.mxu0 %v112
    %135 = vmatprep.subr.bf16.mxu0 0
    %136 = vmatpush1.bf16.msra.mxu0 %v113
    %137 = vmatprep.subr.bf16.mxu0 0
    %138 = vmatpush1.bf16.msra.mxu0 %v114
    %139 = vmatprep.subr.bf16.mxu0 0
    %140 = vmatpush1.bf16.msra.mxu0 0
    %141 = vmatprep.subr.bf16.mxu0 0
    %142 = vmatpush1.bf16.msra.mxu0 0
    %143 = vmatprep.subr.bf16.mxu0 0
    %144 = vmatpush1.bf16.msra.mxu0 0
    %145 = vmatprep.subr.bf16.mxu0 0
    %146 = vmatpush1.bf16.msra.mxu0 0
    %147 = vmatprep.subr.bf16.mxu0 0
    %148 = vmatpush1.bf16.msra.mxu0 0
    %149 = vmatprep.subr.bf16.mxu0 0
    %150 = vmatpush1.bf16.msra.mxu0 0
    %151 = vmatprep.subr.bf16.mxu0 0
    %152 = vmatpush1.bf16.msra.mxu0 0
    %153 = vmatprep.subr.bf16.mxu0 0
    %154 = vmatpush1.bf16.msra.mxu0 0
    %155 = vmatprep.mubr.bf16.mxu0 0
    %156 = vmatmul.mubr.bf16.gmra.mrb[0].mxu0 %v58
    %v157 = vpop.f32.mrb[0].mxu0
    %v158 = vadd.f32 0.0, %v157
    %v159 = vpop.f32.mrb[0].mxu0
    %v160 = vpop.f32.mrb[0].mxu0
    %v161 = vpop.f32.mrb[0].mxu0
    %162 = vdwg.mxu0
    %163 = vst [vmem:[#allocation8] sm:$0xff] %v158
    %v164 = vld [vmem:[#allocation7] sm:$0xff]
    %v165 = vld [vmem:[#allocation7 + $0x8] sm:$0xff]
    %v166 = vld [vmem:[#allocation7 + $0x10] sm:$0xff]
    %v167 = vld [vmem:[#allocation7 + $0x18] sm:$0xff]
    %v168 = vld [vmem:[#allocation7 + $0x20] sm:$0xff]
    %v169 = vld [vmem:[#allocation7 + $0x28] sm:$0xff]
    %v170 = vld [vmem:[#allocation7 + $0x30] sm:$0xff]
    %v171 = vld [vmem:[#allocation7 + $0x38] sm:$0xff]
    %v172 = vld [vmem:[#allocation7 + $0x40] sm:$0xff]
    %v173 = vld [vmem:[#allocation7 + $0x48] sm:$0xff]
    %v174 = vld [vmem:[#allocation7 + $0x50] sm:$0xff]
    %v175 = vld [vmem:[#allocation7 + $0x58] sm:$0xff]
    %v176 = vld [vmem:[#allocation7 + $0x60] sm:$0xff]
    %v177 = vld [vmem:[#allocation7 + $0x68] sm:$0xff]
    %v178 = vld [vmem:[#allocation7 + $0x70] sm:$0xff]
    %v179 = vld [vmem:[#allocation7 + $0x78] sm:$0xff]
    %v196 = vunpack.c.l.b16 %v164
    %v197 = vunpack.c.h.b16 %v164
    %v198 = vunpack.c.l.b16 %v165
    %v199 = vunpack.c.h.b16 %v165
    %v200 = vunpack.c.l.b16 %v166
    %v201 = vunpack.c.h.b16 %v166
    %v202 = vunpack.c.l.b16 %v167
    %v203 = vunpack.c.h.b16 %v167
    %v204 = vunpack.c.l.b16 %v168
    %v205 = vunpack.c.h.b16 %v168
    %v206 = vunpack.c.l.b16 %v169
    %v207 = vunpack.c.h.b16 %v169
    %v208 = vunpack.c.l.b16 %v170
    %v209 = vunpack.c.h.b16 %v170
    %v210 = vunpack.c.l.b16 %v171
    %v211 = vunpack.c.h.b16 %v171
    %v212 = vunpack.c.l.b16 %v172
    %v213 = vunpack.c.h.b16 %v172
    %v214 = vunpack.c.l.b16 %v173
    %v215 = vunpack.c.h.b16 %v173
    %v216 = vunpack.c.l.b16 %v174
    %v217 = vunpack.c.h.b16 %v174
    %v218 = vunpack.c.l.b16 %v175
    %v219 = vunpack.c.h.b16 %v175
    %v220 = vunpack.c.l.b16 %v176
    %v221 = vunpack.c.h.b16 %v176
    %v222 = vunpack.c.l.b16 %v177
    %v223 = vunpack.c.h.b16 %v177
    %v224 = vunpack.c.l.b16 %v178
    %v225 = vunpack.c.h.b16 %v178
    %v226 = vunpack.c.l.b16 %v179
    %v227 = vunpack.c.h.b16 %v179
    %v228 = vpack.c.b16 %v198, %v196
    %v229 = vpack.c.b16 %v199, %v197
    %v230 = vpack.c.b16 %v202, %v200
    %v231 = vpack.c.b16 %v203, %v201
    %v232 = vpack.c.b16 %v206, %v204
    %v233 = vpack.c.b16 %v207, %v205
    %v234 = vpack.c.b16 %v210, %v208
    %v235 = vpack.c.b16 %v211, %v209
    %v236 = vpack.c.b16 %v214, %v212
    %v237 = vpack.c.b16 %v215, %v213
    %v238 = vpack.c.b16 %v218, %v216
    %v239 = vpack.c.b16 %v219, %v217
    %v240 = vpack.c.b16 %v222, %v220
    %v241 = vpack.c.b16 %v223, %v221
    %v242 = vpack.c.b16 %v226, %v224
    %v243 = vpack.c.b16 %v227, %v225
    %260 = vmatprep.subr.bf16.mxu0 %v229
    %261 = vmatpush1.bf16.msra.mxu0 %v228
    %262 = vmatprep.subr.bf16.mxu0 %v231
    %263 = vmatpush1.bf16.msra.mxu0 %v230
    %264 = vmatprep.subr.bf16.mxu0 %v233
    %265 = vmatpush1.bf16.msra.mxu0 %v232
    %266 = vmatprep.subr.bf16.mxu0 %v235
    %267 = vmatpush1.bf16.msra.mxu0 %v234
    %268 = vmatprep.subr.bf16.mxu0 %v237
    %269 = vmatpush1.bf16.msra.mxu0 %v236
    %270 = vmatprep.subr.bf16.mxu0 %v239
    %271 = vmatpush1.bf16.msra.mxu0 %v238
    %272 = vmatprep.subr.bf16.mxu0 %v241
    %273 = vmatpush1.bf16.msra.mxu0 %v240
    %274 = vmatprep.subr.bf16.mxu0 %v243
    %275 = vmatpush1.bf16.msra.mxu0 %v242
    %276 = vmatprep.subr.bf16.mxu0 0
    %277 = vmatpush1.bf16.msra.mxu0 0
    %278 = vmatprep.subr.bf16.mxu0 0
    %279 = vmatpush1.bf16.msra.mxu0 0
    %280 = vmatprep.subr.bf16.mxu0 0
    %281 = vmatpush1.bf16.msra.mxu0 0
    %282 = vmatprep.subr.bf16.mxu0 0
    %283 = vmatpush1.bf16.msra.mxu0 0
    %284 = vmatprep.subr.bf16.mxu0 0
    %285 = vmatpush1.bf16.msra.mxu0 0
    %286 = vmatprep.subr.bf16.mxu0 0
    %287 = vmatpush1.bf16.msra.mxu0 0
    %288 = vmatprep.subr.bf16.mxu0 0
    %289 = vmatpush1.bf16.msra.mxu0 0
    %290 = vmatprep.subr.bf16.mxu0 0
    %291 = vmatpush1.bf16.msra.mxu0 0
    %292 = vmatprep.mubr.bf16.mxu0 0
    %293 = vmatmul.mubr.bf16.gmra.mrb[0].mxu0 %v58
    %v294 = vpop.f32.mrb[0].mxu0
    %v295 = vadd.f32 0.0, %v294
    %v296 = vpop.f32.mrb[0].mxu0
    %v297 = vadd.f32 0.0, %v296
    %v298 = vpop.f32.mrb[0].mxu0
    %v299 = vpop.f32.mrb[0].mxu0
    %300 = vdwg.mxu0
    %301 = vst [vmem:[#allocation9] sm:$0xff] %v295
    %302 = vst [vmem:[#allocation9 + $0x8] sm:$0xff] %v297
    // Predicated region
    $region26: #{tpu_custom_call.1} parent=1 // pred_check
      _
    $region27: #{tpu_custom_call.1} parent=1 // pred_check_branch
      %304 = sbr.rel (0) target = $region29
    $region28: #{tpu_custom_call.1} parent=1 // pred_region
      %s306 = ssub.s32 128, 128
      %307 = vsyncadd [#allocation4], %s306
      %s309 = sshll.u32 [#allocation8], 4
      %s310 = int_to_ptr.vmem [resolvable:$true] %s309
      %312 = dma.vmem_to_hbm [thread:$0]  %s310, 128, %s3, [#allocation4]
    $region29: #{tpu_custom_call.1} parent=1 // pred_fallthru
      _
    // Predicated region
    $region30: #{tpu_custom_call.1} parent=1 // pred_check
      _
    $region31: #{tpu_custom_call.1} parent=1 // pred_check_branch
      %314 = sbr.rel (0) target = $region33
    $region32: #{tpu_custom_call.1} parent=1 // pred_region
      %s316 = ssub.s32 256, 256
      %317 = vsyncadd [#allocation10], %s316
      %s319 = sshll.u32 [#allocation9], 4
      %s320 = int_to_ptr.vmem [resolvable:$true] %s319
      %322 = dma.vmem_to_hbm [thread:$0]  %s320, 256, %s4, [#allocation10]
    $region33: #{tpu_custom_call.1} parent=1 // pred_fallthru
      _
    // Predicated region
    $region34: #{tpu_custom_call.1} parent=1 // pred_check
      _
    $region35: #{tpu_custom_call.1} parent=1 // pred_check_branch
      %324 = sbr.rel (0) target = $region37
    $region36: #{tpu_custom_call.1} parent=1 // pred_region
      %325 = dma.done [#allocation4], 128
    $region37: #{tpu_custom_call.1} parent=1 // pred_fallthru
      _
    // Predicated region
    $region38: #{tpu_custom_call.1} parent=1 // pred_check
      _
    $region39: #{tpu_custom_call.1} parent=1 // pred_check_branch
      %327 = sbr.rel (0) target = $region41
    $region40: #{tpu_custom_call.1} parent=1 // pred_region
      %328 = dma.done [#allocation10], 256
    $region41: #{tpu_custom_call.1} parent=1 // pred_fallthru
      _
    %329 = vsyncpa [#allocation3], 1
    %330 = vsyncpa [#allocation6], 1
    %331 = vsyncpa [#allocation4], 1
    %332 = vsyncpa [#allocation10], 1

</llo_original>
